<compile_context>
chip_gen: v7x
topology: tpu7x:2x2x1
jax: 0.10.0
libtpu: 0.0.40
codegen_flags: <defaults>
</compile_context>

<pallas_src>
import functools

import jax
import jax.numpy as jnp
from jax.experimental import pallas as pl
from jax.experimental.pallas import tpu as pltpu


NUM_STATE = 4       # CartPole-v1 observation dim
HIDDEN = 100
HIDDEN_PAD = 128    # hidden padded to one full f32 lane register
NUM_ACTION = 2      # CartPole-v1 action space
OUT_LANES = 128     # lane-dense output slab width


def _round_up(x, m):
    return (x + m - 1) // m * m


def policy_kernel(state_ref, w1_ref, b1_ref, wd_ref, bd_ref, out_ref):
    # state: (TB, 4)      w1: (4, 128)   b1: (1, 128)
    # wd:    (1, 128)     bd: (1, 1)     out: (TB, 128)
    x = state_ref[...]
    w1 = w1_ref[...]

    # fc1 + ReLU as 4 statically-unrolled broadcast-FMAs on the VPU (no MXU trip).
    h = x[:, 0:1] * w1[0:1, :] + b1_ref[...]
    for k in range(1, NUM_STATE):
        h = h + x[:, k : k + 1] * w1[k : k + 1, :]
    h = jnp.maximum(h, 0.0)                                          # (TB, 128)

    # fc2 + 2-way softmax == sigmoid of the logit difference.
    d = jnp.sum(h * wd_ref[...], axis=-1, keepdims=True) + bd_ref[...]  # (TB, 1)
    p1 = 1.0 / (1.0 + jnp.exp(-d))     # exact sigmoid (keeps 1e-5 tolerance)
    p0 = 1.0 - p1

    # Lane-dense store: lane 0 = P(action 0), lane 1 = P(action 1), rest 0.
    lane = jax.lax.broadcasted_iota(jnp.int32, out_ref.shape, 1)
    out_ref[...] = jnp.where(
        lane == 0, p0, jnp.where(lane == 1, p1, 0.0)
    ).astype(out_ref.dtype)


@functools.partial(jax.jit, static_argnames=("block_b",))
def policy_forward(state, w1p, b1p, wd, bd, *, block_b=512):
    """state: (B, NUM_STATE) f32.  Params must come from prepare_params()."""
    B = state.shape[0]
    tb = min(block_b, _round_up(B, 8))      # rows per grid step (sublane multiple)
    b_pad = _round_up(B, tb)
    if b_pad != B:
        state = jnp.pad(state, ((0, b_pad - B), (0, 0)))

    out = pl.pallas_call(
        policy_kernel,
        out_shape=jax.ShapeDtypeStruct((b_pad, OUT_LANES), jnp.float32),
        grid_spec=pltpu.PrefetchScalarGridSpec(
            num_scalar_prefetch=0,
            grid=(b_pad // tb,),
            in_specs=[
                pl.BlockSpec((tb, NUM_STATE), lambda i: (i, 0)),          # state tile
                pl.BlockSpec((NUM_STATE, HIDDEN_PAD), lambda i: (0, 0)),  # w1 (VMEM-resident)
                pl.BlockSpec((1, HIDDEN_PAD), lambda i: (0, 0)),          # b1 (resident)
                pl.BlockSpec((1, HIDDEN_PAD), lambda i: (0, 0)),          # wd (resident)
                pl.BlockSpec((1, 1), lambda i: (0, 0)),                   # bd (resident)
            ],
            out_specs=pl.BlockSpec((tb, OUT_LANES), lambda i: (i, 0)),
        ),
        compiler_params=pltpu.CompilerParams(
            dimension_semantics=("parallel",),  # batch axis shards across v7x's 2 TCs
        ),
    )(state, w1p, b1p, wd, bd)

    return out[:B, :NUM_ACTION]


def init_params(key):
    # Deterministic init mimicking PyTorch Linear default:
    # U(-1/sqrt(fan_in), 1/sqrt(fan_in)) for weight and bias.
    k1, k2, k3, k4 = jax.random.split(key, 4)
    bound1 = 1.0 / jnp.sqrt(NUM_STATE)
    bound2 = 1.0 / jnp.sqrt(HIDDEN)
    # stored pre-transposed: (in_features, out_features), so forward is x @ W.
    w1 = jax.random.uniform(k1, (NUM_STATE, HIDDEN), jnp.float32, -bound1, bound1)
    b1 = jax.random.uniform(k2, (1, HIDDEN), jnp.float32, -bound1, bound1)
    w2 = jax.random.uniform(k3, (HIDDEN, NUM_ACTION), jnp.float32, -bound2, bound2)
    b2 = jax.random.uniform(k4, (1, NUM_ACTION), jnp.float32, -bound2, bound2)
    return w1, b1, w2, b2


def prepare_params(w1, b1, w2, b2):
    """Pad hidden 100->128 and fold fc2 into a single logit-difference column."""
    pad_h = HIDDEN_PAD - HIDDEN
    w1p = jnp.pad(w1, ((0, 0), (0, pad_h)))
    b1p = jnp.pad(b1, ((0, 0), (0, pad_h)))
    wd = jnp.pad((w2[:, 1] - w2[:, 0])[None, :], ((0, 0), (0, pad_h)))
    bd = (b2[:, 1] - b2[:, 0]).reshape(1, 1)
    return w1p, b1p, wd, bd


def reference_forward(state, w1, b1, w2, b2):
    h = jnp.maximum(state @ w1 + b1, 0.0)
    logits = h @ w2 + b2
    return jax.nn.softmax(logits, axis=1)


if __name__ == "__main__":
    key = jax.random.PRNGKey(0)
    kparam, kstate = jax.random.split(key)

    w1, b1, w2, b2 = init_params(kparam)
    w1p, b1p, wd, bd = prepare_params(w1, b1, w2, b2)

    batch = 8
    state = jax.random.normal(kstate, (batch, NUM_STATE), jnp.float32)

    probs = policy_forward(state, w1p, b1p, wd, bd)
    probs = jax.block_until_ready(probs)

    ref = reference_forward(state, w1, b1, w2, b2)
    assert probs.shape == (batch, NUM_ACTION)
    assert jnp.allclose(probs, ref, atol=1e-5, rtol=1e-5), "mismatch vs JAX reference"
    assert jnp.allclose(jnp.sum(probs, axis=1), 1.0, atol=1e-5), "rows must sum to 1"

    # Also exercise the batch-padding path (B not a multiple of the sublane width).
    state2 = jax.random.normal(jax.random.PRNGKey(1), (37, NUM_STATE), jnp.float32)
    probs2 = jax.block_until_ready(policy_forward(state2, w1p, b1p, wd, bd))
    ref2 = reference_forward(state2, w1, b1, w2, b2)
    assert probs2.shape == (37, NUM_ACTION)
    assert jnp.allclose(probs2, ref2, atol=1e-5, rtol=1e-5), "padded-batch mismatch"

    print("KERNEL_OK")
</pallas_src>

<mosaic_0001>
module attributes {stable_mosaic.version = 11 : i64} {
  func.func @policy_kernel(%arg0: i32, %arg1: memref<8x4xf32, #tpu.memory_space<vmem>>, %arg2: memref<4x128xf32, #tpu.memory_space<vmem>>, %arg3: memref<1x128xf32, #tpu.memory_space<vmem>>, %arg4: memref<1x128xf32, #tpu.memory_space<vmem>>, %arg5: memref<1x1xf32, #tpu.memory_space<vmem>>, %arg6: memref<8x128xf32, #tpu.memory_space<vmem>>) attributes {dimension_semantics = [#tpu.dimension_semantics<parallel>], iteration_bounds = array<i64: 1>, scalar_prefetch = 0 : i64, scratch_operands = 0 : i64, tpu.core_type = #tpu.core_type<tc>, window_params = [{transform_indices = @transform_0, window_bounds = array<i64: 8, 4>}, {pipeline_mode = #tpu.pipeline_mode<synchronous>, transform_indices = @transform_1, window_bounds = array<i64: 4, 128>}, {pipeline_mode = #tpu.pipeline_mode<synchronous>, transform_indices = @transform_2, window_bounds = array<i64: 1, 128>}, {pipeline_mode = #tpu.pipeline_mode<synchronous>, transform_indices = @transform_3, window_bounds = array<i64: 1, 128>}, {pipeline_mode = #tpu.pipeline_mode<synchronous>, transform_indices = @transform_4, window_bounds = array<i64: 1, 1>}, {transform_indices = @transform_5, window_bounds = array<i64: 8, 128>}]} {
    %c0 = arith.constant 0 : index
    %c0_0 = arith.constant 0 : index
    %0 = vector.load %arg1[%c0, %c0_0] : memref<8x4xf32, #tpu.memory_space<vmem>>, vector<8x4xf32>
    %c0_1 = arith.constant 0 : index
    %c0_2 = arith.constant 0 : index
    %1 = vector.load %arg2[%c0_1, %c0_2] : memref<4x128xf32, #tpu.memory_space<vmem>>, vector<4x128xf32>
    %2 = vector.extract_strided_slice %0 {offsets = [0, 0], sizes = [8, 1], strides = [1, 1]} : vector<8x4xf32> to vector<8x1xf32>
    %3 = vector.extract_strided_slice %1 {offsets = [0, 0], sizes = [1, 128], strides = [1, 1]} : vector<4x128xf32> to vector<1x128xf32>
    %4 = vector.broadcast %2 : vector<8x1xf32> to vector<8x128xf32>
    %5 = vector.broadcast %3 : vector<1x128xf32> to vector<8x128xf32>
    %6 = arith.mulf %4, %5 : vector<8x128xf32>
    %c0_3 = arith.constant 0 : index
    %c0_4 = arith.constant 0 : index
    %7 = vector.load %arg3[%c0_3, %c0_4] : memref<1x128xf32, #tpu.memory_space<vmem>>, vector<1x128xf32>
    %8 = vector.broadcast %7 : vector<1x128xf32> to vector<8x128xf32>
    %9 = arith.addf %6, %8 : vector<8x128xf32>
    %10 = vector.extract_strided_slice %0 {offsets = [0, 1], sizes = [8, 1], strides = [1, 1]} : vector<8x4xf32> to vector<8x1xf32>
    %11 = vector.extract_strided_slice %1 {offsets = [1, 0], sizes = [1, 128], strides = [1, 1]} : vector<4x128xf32> to vector<1x128xf32>
    %12 = vector.broadcast %10 : vector<8x1xf32> to vector<8x128xf32>
    %13 = vector.broadcast %11 : vector<1x128xf32> to vector<8x128xf32>
    %14 = arith.mulf %12, %13 : vector<8x128xf32>
    %15 = arith.addf %9, %14 : vector<8x128xf32>
    %16 = vector.extract_strided_slice %0 {offsets = [0, 2], sizes = [8, 1], strides = [1, 1]} : vector<8x4xf32> to vector<8x1xf32>
    %17 = vector.extract_strided_slice %1 {offsets = [2, 0], sizes = [1, 128], strides = [1, 1]} : vector<4x128xf32> to vector<1x128xf32>
    %18 = vector.broadcast %16 : vector<8x1xf32> to vector<8x128xf32>
    %19 = vector.broadcast %17 : vector<1x128xf32> to vector<8x128xf32>
    %20 = arith.mulf %18, %19 : vector<8x128xf32>
    %21 = arith.addf %15, %20 : vector<8x128xf32>
    %22 = vector.extract_strided_slice %0 {offsets = [0, 3], sizes = [8, 1], strides = [1, 1]} : vector<8x4xf32> to vector<8x1xf32>
    %23 = vector.extract_strided_slice %1 {offsets = [3, 0], sizes = [1, 128], strides = [1, 1]} : vector<4x128xf32> to vector<1x128xf32>
    %24 = vector.broadcast %22 : vector<8x1xf32> to vector<8x128xf32>
    %25 = vector.broadcast %23 : vector<1x128xf32> to vector<8x128xf32>
    %26 = arith.mulf %24, %25 : vector<8x128xf32>
    %27 = arith.addf %21, %26 : vector<8x128xf32>
    %cst = arith.constant 0.000000e+00 : f32
    %28 = vector.broadcast %cst : f32 to vector<8x128xf32>
    %29 = arith.maximumf %27, %28 : vector<8x128xf32>
    %c0_5 = arith.constant 0 : index
    %c0_6 = arith.constant 0 : index
    %30 = vector.load %arg4[%c0_5, %c0_6] : memref<1x128xf32, #tpu.memory_space<vmem>>, vector<1x128xf32>
    %31 = vector.broadcast %30 : vector<1x128xf32> to vector<8x128xf32>
    %32 = arith.mulf %29, %31 : vector<8x128xf32>
    %cst_7 = arith.constant dense<0.000000e+00> : vector<8xf32>
    %33 = vector.multi_reduction <add>, %32, %cst_7 [1] : vector<8x128xf32> to vector<8xf32>
    %34 = vector.shape_cast %33 : vector<8xf32> to vector<8x1xf32>
    %c0_8 = arith.constant 0 : index
    %c0_9 = arith.constant 0 : index
    %35 = vector.load %arg5[%c0_8, %c0_9] : memref<1x1xf32, #tpu.memory_space<vmem>>, vector<1x1xf32>
    %36 = vector.broadcast %35 : vector<1x1xf32> to vector<8x1xf32>
    %37 = arith.addf %34, %36 : vector<8x1xf32>
    %cst_10 = arith.constant 0.000000e+00 : f32
    %38 = vector.broadcast %cst_10 : f32 to vector<8x1xf32>
    %39 = arith.subf %38, %37 : vector<8x1xf32>
    %40 = math.exp %39 : vector<8x1xf32>
    %cst_11 = arith.constant 1.000000e+00 : f32
    %41 = vector.broadcast %cst_11 : f32 to vector<8x1xf32>
    %42 = arith.addf %41, %40 : vector<8x1xf32>
    %cst_12 = arith.constant 1.000000e+00 : f32
    %43 = vector.broadcast %cst_12 : f32 to vector<8x1xf32>
    %44 = arith.divf %43, %42 : vector<8x1xf32>
    %cst_13 = arith.constant 1.000000e+00 : f32
    %45 = vector.broadcast %cst_13 : f32 to vector<8x1xf32>
    %46 = arith.subf %45, %44 : vector<8x1xf32>
    %47 = tpu.iota {dimensions = array<i32: 1>} : vector<8x128xi32>
    %c0_i32 = arith.constant 0 : i32
    %48 = vector.broadcast %c0_i32 : i32 to vector<8x128xi32>
    %49 = arith.cmpi eq, %47, %48 : vector<8x128xi32>
    %c1_i32 = arith.constant 1 : i32
    %50 = vector.broadcast %c1_i32 : i32 to vector<8x128xi32>
    %51 = arith.cmpi eq, %47, %50 : vector<8x128xi32>
    %cst_14 = arith.constant 0.000000e+00 : f32
    %52 = vector.shape_cast %44 : vector<8x1xf32> to vector<8x1xf32>
    %53 = vector.broadcast %52 : vector<8x1xf32> to vector<8x128xf32>
    %54 = vector.broadcast %cst_14 : f32 to vector<8x128xf32>
    %55 = arith.select %51, %53, %54 : vector<8x128xi1>, vector<8x128xf32>
    %56 = vector.shape_cast %46 : vector<8x1xf32> to vector<8x1xf32>
    %57 = vector.broadcast %56 : vector<8x1xf32> to vector<8x128xf32>
    %58 = arith.select %49, %57, %55 : vector<8x128xi1>, vector<8x128xf32>
    %c0_15 = arith.constant 0 : index
    %c0_16 = arith.constant 0 : index
    %59 = vector.load %arg6[%c0_15, %c0_16] : memref<8x128xf32, #tpu.memory_space<vmem>>, vector<8x128xf32>
    tpu.vector_store %arg6[%c0_15, %c0_16], %58 {strides = array<i32>} : memref<8x128xf32, #tpu.memory_space<vmem>>, vector<8x128xf32>,
    return
  }
  func.func @transform_0(%arg0: i32) -> (i32, i32) {
    %c0_i32 = arith.constant 0 : i32
    %c0_i32_0 = arith.constant 0 : i32
    return %arg0, %c0_i32 : i32, i32
  }
  func.func @transform_1(%arg0: i32) -> (i32, i32) {
    %c0_i32 = arith.constant 0 : i32
    %c0_i32_0 = arith.constant 0 : i32
    %c0_i32_1 = arith.constant 0 : i32
    return %c0_i32, %c0_i32_0 : i32, i32
  }
  func.func @transform_2(%arg0: i32) -> (i32, i32) {
    %c0_i32 = arith.constant 0 : i32
    %c0_i32_0 = arith.constant 0 : i32
    %c0_i32_1 = arith.constant 0 : i32
    return %c0_i32, %c0_i32_0 : i32, i32
  }
  func.func @transform_3(%arg0: i32) -> (i32, i32) {
    %c0_i32 = arith.constant 0 : i32
    %c0_i32_0 = arith.constant 0 : i32
    %c0_i32_1 = arith.constant 0 : i32
    return %c0_i32, %c0_i32_0 : i32, i32
  }
  func.func @transform_4(%arg0: i32) -> (i32, i32) {
    %c0_i32 = arith.constant 0 : i32
    %c0_i32_0 = arith.constant 0 : i32
    %c0_i32_1 = arith.constant 0 : i32
    return %c0_i32, %c0_i32_0 : i32, i32
  }
  func.func @transform_5(%arg0: i32) -> (i32, i32) {
    %c0_i32 = arith.constant 0 : i32
    %c0_i32_0 = arith.constant 0 : i32
    return %arg0, %c0_i32 : i32, i32
  }
}

</mosaic_0001>

<llo_original>
// kernel: policy_forward.1
$region0: #{policy_forward.1}
  #allocation0 [shape = 'u32[]', space=smem, size = 0x4, offset = 0x4, fixed_abs, tag = 'smem constant byte address 0x4 - core index']
  #allocation1 [shape = 'u32[144,128]{1,0:T(1,128)}', space=vmem, size = 0x12000, scoped, tag = 'internal scratch']
  #allocation2 [shape = 'f32[1,1]{1,0:T(1,128)S(1)}', space=vmem, size = 0x200, scoped, tag = 'scoped memory for policy_forward.1']
  %s0 = inlined_call_operand.vmem [shape: f32[8,4], index: 0, kind: input, shape index: {}]
  %s1 = inlined_call_operand.vmem [shape: f32[4,128], index: 1, kind: input, shape index: {}]
  %s2 = inlined_call_operand.vmem [shape: f32[1,128], index: 2, kind: input, shape index: {}]
  %s3 = inlined_call_operand.vmem [shape: f32[1,128], index: 3, kind: input, shape index: {}]
  %s4 = inlined_call_operand.<no memory space> [shape: f32[1,1], index: 4, kind: input, shape index: {}]
  %s5 = inlined_call_operand.vmem [shape: f32[8,128], index: 5, kind: output, shape index: {}]
  %s6 = sld [smem:[#allocation0]]
  $region30: #{policy_forward.1} parent=0
    _
  %s8 = ssub.s32 1, %s6
  %s9 = scalar_select 0, %s8, %s6
  %v10 = vstv %s4
  %11 = vst [vmem:[#allocation2] sm:$0x1] %v10
  // Predicated region
  $region2: #{policy_forward.1} parent=0 // pred_check
    _
  $region3: #{policy_forward.1} parent=0 // pred_check_branch
    %13 = sbr.rel (0) target = $region5
  $region4: #{policy_forward.1} parent=0 // pred_region
    _
  $region5: #{policy_forward.1} parent=0 // pred_fallthru
    _
  // Predicated region
  $region6: #{policy_forward.1} parent=0 // pred_check
    _
  $region7: #{policy_forward.1} parent=0 // pred_check_branch
    %15 = sbr.rel (0) target = $region9
  $region8: #{policy_forward.1} parent=0 // pred_region
    _
  $region9: #{policy_forward.1} parent=0 // pred_fallthru
    _
  // Predicated region
  $region10: #{policy_forward.1} parent=0 // pred_check
    _
  $region11: #{policy_forward.1} parent=0 // pred_check_branch
    %17 = sbr.rel (0) target = $region13
  $region12: #{policy_forward.1} parent=0 // pred_region
    _
  $region13: #{policy_forward.1} parent=0 // pred_fallthru
    _
  // Predicated region
  $region14: #{policy_forward.1} parent=0 // pred_check
    _
  $region15: #{policy_forward.1} parent=0 // pred_check_branch
    %19 = sbr.rel (0) target = $region17
  $region16: #{policy_forward.1} parent=0 // pred_region
    _
  $region17: #{policy_forward.1} parent=0 // pred_fallthru
    _
  // Predicated region
  $region18: #{policy_forward.1} parent=0 // pred_check
    _
  $region19: #{policy_forward.1} parent=0 // pred_check_branch
    %21 = sbr.rel (0) target = $region21
  $region20: #{policy_forward.1} parent=0 // pred_region
    _
  $region21: #{policy_forward.1} parent=0 // pred_fallthru
    _
  %v22 = vld [vmem:[%s0] sm:$0xff]
  %v23 = vld [vmem:[%s1] sm:$0xf]
  %25 = vset.pattern.permute.xlu0 0
  %26 = vperm.xlu0 %25, %v22
  %v27 = vpop.permute.xlu0 %26
  %v29 = vlaneseq
  %v30 = vshrl.u32 %v29, 7
  %v31 = vsub.s32 0, %v30
  %v32 = vrot.slane %v23, %v31
  %v33 = vmul.f32 %v27, %v32
  %v34 = vld [vmem:[%s2] sm:$0x1]
  %v36 = vlaneseq
  %v37 = vshrl.u32 %v36, 7
  %v38 = vsub.s32 0, %v37
  %v39 = vrot.slane %v34, %v38
  %v41 = vadd.f32 %v33, %v39
  %42 = vset.pattern.permute.xlu0 1
  %43 = vperm.xlu0 %42, %v22
  %v44 = vpop.permute.xlu0 %43
  %v46 = vlaneseq
  %v47 = vshrl.u32 %v46, 7
  %v48 = vsub.s32 1, %v47
  %v49 = vrot.slane %v23, %v48
  %v50 = vmul.f32 %v44, %v49
  %v51 = vadd.f32 %v41, %v50
  %52 = vset.pattern.permute.xlu0 2
  %53 = vperm.xlu0 %52, %v22
  %v54 = vpop.permute.xlu0 %53
  %v56 = vlaneseq
  %v57 = vshrl.u32 %v56, 7
  %v58 = vsub.s32 2, %v57
  %v59 = vrot.slane %v23, %v58
  %v60 = vmul.f32 %v54, %v59
  %v61 = vadd.f32 %v51, %v60
  %62 = vset.pattern.permute.xlu0 3
  %63 = vperm.xlu0 %62, %v22
  %v64 = vpop.permute.xlu0 %63
  %v66 = vlaneseq
  %v67 = vshrl.u32 %v66, 7
  %v68 = vsub.s32 3, %v67
  %v69 = vrot.slane %v23, %v68
  %v70 = vmul.f32 %v64, %v69
  %v71 = vadd.f32 %v61, %v70
  %v72 = vmax.f32 %v71, 0.0
  %v73 = vld [vmem:[%s3] sm:$0x1]
  %v75 = vlaneseq
  %v76 = vshrl.u32 %v75, 7
  %v77 = vsub.s32 0, %v76
  %v78 = vrot.slane %v73, %v77
  %v80 = vmul.f32 %v72, %v78
  %81 = vadd.xlane.f32.xlu0 %v80
  %v82 = vpop.xlane.xlu0 %81
  %v83 = vld [vmem:[#allocation2] sm:$0x1]
  %v85 = vlaneseq
  %v86 = vshrl.u32 %v85, 7
  %v87 = vsub.s32 0, %v86
  %v88 = vrot.slane %v83, %v87
  %v90 = vadd.f32 %v82, %v88
  %v91 = vsub.f32 0.0, %v90
  %v92 = vmul.f32 %v91, 1.442695
  %v93 = vpow.pop %v92
  %v94 = vadd.f32 %v93, 1.0
  %v95 = vrcp.pop %v94
  %v96 = vmul.f32 1.0, %v95
  %v97 = vsub.f32 1.0, %v96
  %v98 = vlaneseq
  %v99 = vand.u32 %v98, 127
  %vm100 = vcmp.eq.s32.totalorder %v99, 0
  %vm101 = vcmp.eq.s32.totalorder %v99, 1
  %103 = vset.pattern.permute.xlu0 0
  %104 = vperm.xlu0 %103, %v96
  %v105 = vpop.permute.xlu0 %104
  %v107 = vsel %vm101, %v105, 0.0
  %109 = vset.pattern.permute.xlu0 0
  %110 = vperm.xlu0 %109, %v97
  %v111 = vpop.permute.xlu0 %110
  %v113 = vsel %vm100, %v111, %v107
  %114 = vst [vmem:[%s5] sm:$0xff] %v113
  // Predicated region
  $region22: #{policy_forward.1} parent=0 // pred_check
    _
  $region23: #{policy_forward.1} parent=0 // pred_check_branch
    %116 = sbr.rel (0) target = $region25
  $region24: #{policy_forward.1} parent=0 // pred_region
    _
  $region25: #{policy_forward.1} parent=0 // pred_fallthru
    _
  // Predicated region
  $region26: #{policy_forward.1} parent=0 // pred_check
    _
  $region27: #{policy_forward.1} parent=0 // pred_check_branch
    %118 = sbr.rel (0) target = $region29
  $region28: #{policy_forward.1} parent=0 // pred_region
    _
  $region29: #{policy_forward.1} parent=0 // pred_fallthru
    _

</llo_original>
